<compile_context>
chip_gen: v6e
topology: v6e:2x2x1
jax: 0.10.0
libtpu: 0.0.40
codegen_flags: <defaults>
</compile_context>

<pallas_src>
import math

import jax
import jax.numpy as jnp
from jax import lax
from jax.experimental import pallas as pl
from jax.experimental.pallas import tpu as pltpu

LN_EPS = 1e-5  # nn.LayerNorm default


def patch_embed_kernel(p_ref, w_ref, b_ref, g_ref, beta_ref, o_ref):
    # Conv-as-matmul on the MXU: bf16 operands, f32 accumulate.
    y = jnp.dot(p_ref[...], w_ref[...], preferred_element_type=jnp.float32)  # [tm, E]
    y = y + b_ref[...]                                                        # exact f32 conv bias
    # Per-token LayerNorm over embed_dim, single-pass stats (biased var, PyTorch semantics).
    e = y.shape[-1]
    s1 = jnp.sum(y, axis=-1, keepdims=True)             # [tm, 1]
    s2 = jnp.sum(y * y, axis=-1, keepdims=True)         # [tm, 1]
    mean = s1 * (1.0 / e)
    var = jnp.maximum(s2 * (1.0 / e) - mean * mean, 0.0)
    inv = lax.rsqrt(var + LN_EPS)                       # [tm, 1]
    o_ref[...] = ((y - mean) * (inv * g_ref[...]) + beta_ref[...]).astype(o_ref.dtype)


def _round_up(x, m):
    return (x + m - 1) // m * m


def _pick_block_m(m, requested):
    """Largest multiple of 16 <= requested that divides m (so m_pad == m, no output
    padding / post-kernel slice copy); falls back to round_up(requested, 16)."""
    requested = max(16, min(requested, m))
    bm = _round_up(requested, 16)
    for cand in range(bm, 15, -16):
        if m % cand == 0:
            return cand, m
    return bm, _round_up(m, bm)


def _extract_patches(x_nchw, k, stride, padding, dtype):
    """im2col via one grouped-conv gather; feature axis ordered (cin, kh, kw)."""
    n = x_nchw.shape[0]
    patches = lax.conv_general_dilated_patches(
        x_nchw.astype(dtype),
        filter_shape=(k, k),
        window_strides=(stride, stride),
        padding=[(padding, padding), (padding, padding)],
        dimension_numbers=("NCHW", "OIHW", "NHWC"))          # [N, Ho, Wo, Cin*K*K]
    _, ho, wo, kdim = patches.shape
    return patches.reshape(n * ho * wo, kdim), (n, ho, wo)


def overlap_patch_embed(x_nchw, proj_w, proj_b, ln_g, ln_b, *,
                        stride, padding, block_m=512, out_dtype=jnp.bfloat16):
    """Forward of OverlapPatchEmbed. Returns (tokens [N, Ho*Wo, E], Ho, Wo)."""
    cout, cin, k, _ = proj_w.shape
    kdim = k * k * cin

    # Streamed operand: bf16 patches with their NATURAL last dim (no K padding in HBM).
    patches, (n, ho, wo) = _extract_patches(x_nchw, k, stride, padding, jnp.bfloat16)
    m = patches.shape[0]

    out_itemsize = jnp.dtype(out_dtype).itemsize
    cap = 4096 if out_itemsize <= 2 else 2048            # v7x scoped-VMEM guard
    block_m, m_pad = _pick_block_m(m, min(block_m, cap))
    if m_pad != m:
        patches = jnp.pad(patches, ((0, m_pad - m), (0, 0)))

    # Weight as [Kdim, E] with (cin, kh, kw)-major K order to match the patch layout.
    w2d = jnp.transpose(proj_w.reshape(cout, kdim)).astype(jnp.bfloat16)
    b2d = proj_b.reshape(1, cout).astype(jnp.float32)
    g2d = ln_g.reshape(1, cout).astype(jnp.float32)
    beta2d = ln_b.reshape(1, cout).astype(jnp.float32)

    grid = (m_pad // block_m,)
    cost = pl.CostEstimate(
        flops=2 * m_pad * kdim * cout + 8 * m_pad * cout,
        transcendentals=m_pad,                            # one rsqrt per token
        bytes_accessed=int(patches.size * 2 + w2d.size * 2
                           + 3 * cout * 4 + m_pad * cout * out_itemsize))

    out_flat = pl.pallas_call(
        patch_embed_kernel,
        out_shape=jax.ShapeDtypeStruct((m_pad, cout), out_dtype),
        grid_spec=pltpu.PrefetchScalarGridSpec(
            num_scalar_prefetch=0,
            grid=grid,
            in_specs=[
                pl.BlockSpec((block_m, kdim), lambda i: (i, 0)),  # patch tile (streamed, pipelined)
                pl.BlockSpec((kdim, cout), lambda i: (0, 0)),     # conv weight (resident)
                pl.BlockSpec((1, cout), lambda i: (0, 0)),        # conv bias   (resident)
                pl.BlockSpec((1, cout), lambda i: (0, 0)),        # LN gamma    (resident)
                pl.BlockSpec((1, cout), lambda i: (0, 0)),        # LN beta     (resident)
            ],
            out_specs=pl.BlockSpec((block_m, cout), lambda i: (i, 0)),
        ),
        compiler_params=pltpu.CompilerParams(
            dimension_semantics=("parallel",),            # independent M tiles (2 TCs on v7x)
            vmem_limit_bytes=32 * 1024 * 1024,
        ),
        cost_estimate=cost,
    )(patches, w2d, b2d, g2d, beta2d)

    out_flat = out_flat if m_pad == m else out_flat[:m]
    tokens = out_flat.reshape(n, ho * wo, cout)           # free reshape when m_pad == m
    return tokens, ho, wo


def _reference(x, w, b, g, beta, stride, padding):
    """Pure-JAX f32 reference of OverlapPatchEmbed.forward."""
    conv = lax.conv_general_dilated(
        x, w, window_strides=(stride, stride),
        padding=[(padding, padding), (padding, padding)],
        dimension_numbers=("NCHW", "OIHW", "NCHW"))
    conv = conv + b.reshape(1, -1, 1, 1)
    n, c, ho, wo = conv.shape
    tok = jnp.transpose(conv.reshape(n, c, ho * wo), (0, 2, 1))   # [N, Ho*Wo, E]
    mean = tok.mean(axis=-1, keepdims=True)
    var = ((tok - mean) ** 2).mean(axis=-1, keepdims=True)
    return (tok - mean) * lax.rsqrt(var + LN_EPS) * g + beta, ho, wo


if __name__ == "__main__":
    # Small OverlapPatchEmbed: img=64, patch_size=7, stride=4, in_chans=3, embed_dim=128.
    N, in_chans, H, W = 2, 3, 64, 64
    embed_dim, patch_size, stride = 128, 7, 4
    padding = patch_size // 2

    key = jax.random.PRNGKey(0)
    kx, kw = jax.random.split(key)
    x = jax.random.normal(kx, (N, in_chans, H, W), dtype=jnp.float32)
    # Conv2d init from _init_weights: normal(0, sqrt(2/fan_out)), bias=0.
    fan_out = patch_size * patch_size * embed_dim
    proj_w = math.sqrt(2.0 / fan_out) * jax.random.normal(
        kw, (embed_dim, in_chans, patch_size, patch_size), dtype=jnp.float32)
    proj_b = jnp.zeros((embed_dim,), jnp.float32)
    # LayerNorm init: weight=1, bias=0.
    ln_g = jnp.ones((embed_dim,), jnp.float32)
    ln_b = jnp.zeros((embed_dim,), jnp.float32)

    # M = N*Ho*Wo = 2*16*16 = 512; block_m=256 divides it exactly -> grid of 2 tiles.
    out, ho, wo = overlap_patch_embed(x, proj_w, proj_b, ln_g, ln_b,
                                      stride=stride, padding=padding, block_m=256)
    out = jax.block_until_ready(out)

    # References: full-f32 module semantics, plus one with bf16-rounded matmul operands
    # (what the MXU sees) for a tight numerical check. bf16 operands/output are an
    # intentional fidelity tradeoff (documented) vs the f32 PyTorch module.
    ref_f32, rho, rwo = _reference(x, proj_w, proj_b, ln_g, ln_b, stride, padding)
    x_bf = x.astype(jnp.bfloat16).astype(jnp.float32)
    w_bf = proj_w.astype(jnp.bfloat16).astype(jnp.float32)
    ref_bf, _, _ = _reference(x_bf, w_bf, proj_b, ln_g, ln_b, stride, padding)

    out_f32 = out.astype(jnp.float32)
    assert (ho, wo) == (rho, rwo) == (H // stride, W // stride)
    assert out.shape == (N, ho * wo, embed_dim)
    assert out.dtype == jnp.bfloat16
    assert float(jnp.max(jnp.abs(out_f32 - ref_bf))) < 3e-2    # kernel math (bf16 operands + bf16 store)
    assert float(jnp.max(jnp.abs(out_f32 - ref_f32))) < 2e-1   # module-level fidelity

    print("KERNEL_OK")
</pallas_src>

<mosaic_0001>
module attributes {stable_mosaic.version = 11 : i64} {
  func.func @patch_embed_kernel(%arg0: i32, %arg1: memref<256x147xbf16, #tpu.memory_space<vmem>>, %arg2: memref<147x128xbf16, #tpu.memory_space<vmem>>, %arg3: memref<1x128xf32, #tpu.memory_space<vmem>>, %arg4: memref<1x128xf32, #tpu.memory_space<vmem>>, %arg5: memref<1x128xf32, #tpu.memory_space<vmem>>, %arg6: memref<256x128xbf16, #tpu.memory_space<vmem>>) attributes {dimension_semantics = [#tpu.dimension_semantics<parallel>], iteration_bounds = array<i64: 2>, scalar_prefetch = 0 : i64, scratch_operands = 0 : i64, tpu.core_type = #tpu.core_type<tc>, window_params = [{transform_indices = @transform_0, window_bounds = array<i64: 256, 147>}, {pipeline_mode = #tpu.pipeline_mode<synchronous>, transform_indices = @transform_1, window_bounds = array<i64: 147, 128>}, {pipeline_mode = #tpu.pipeline_mode<synchronous>, transform_indices = @transform_2, window_bounds = array<i64: 1, 128>}, {pipeline_mode = #tpu.pipeline_mode<synchronous>, transform_indices = @transform_3, window_bounds = array<i64: 1, 128>}, {pipeline_mode = #tpu.pipeline_mode<synchronous>, transform_indices = @transform_4, window_bounds = array<i64: 1, 128>}, {transform_indices = @transform_5, window_bounds = array<i64: 256, 128>}]} {
    %c0 = arith.constant 0 : index
    %c0_0 = arith.constant 0 : index
    %0 = vector.load %arg1[%c0, %c0_0] : memref<256x147xbf16, #tpu.memory_space<vmem>>, vector<256x147xbf16>
    %c0_1 = arith.constant 0 : index
    %c0_2 = arith.constant 0 : index
    %1 = vector.load %arg2[%c0_1, %c0_2] : memref<147x128xbf16, #tpu.memory_space<vmem>>, vector<147x128xbf16>
    %cst = arith.constant dense<0.000000e+00> : vector<256x128xf32>
    %2 = tpu.matmul %0, %1, %cst {dimension_numbers = #tpu.dot_dimension_numbers<[1], [0], [0], [1], [0, 0, 1, 1], [], []>} : vector<256x147xbf16>, vector<147x128xbf16>, vector<256x128xf32> -> vector<256x128xf32>
    %c0_3 = arith.constant 0 : index
    %c0_4 = arith.constant 0 : index
    %3 = vector.load %arg3[%c0_3, %c0_4] : memref<1x128xf32, #tpu.memory_space<vmem>>, vector<1x128xf32>
    %4 = vector.broadcast %3 : vector<1x128xf32> to vector<256x128xf32>
    %5 = arith.addf %2, %4 : vector<256x128xf32>
    %cst_5 = arith.constant dense<0.000000e+00> : vector<256xf32>
    %6 = vector.multi_reduction <add>, %5, %cst_5 [1] : vector<256x128xf32> to vector<256xf32>
    %7 = vector.shape_cast %6 : vector<256xf32> to vector<256x1xf32>
    %8 = arith.mulf %5, %5 : vector<256x128xf32>
    %cst_6 = arith.constant dense<0.000000e+00> : vector<256xf32>
    %9 = vector.multi_reduction <add>, %8, %cst_6 [1] : vector<256x128xf32> to vector<256xf32>
    %10 = vector.shape_cast %9 : vector<256xf32> to vector<256x1xf32>
    %cst_7 = arith.constant 7.812500e-03 : f32
    %11 = vector.broadcast %cst_7 : f32 to vector<256x1xf32>
    %12 = arith.mulf %7, %11 : vector<256x1xf32>
    %cst_8 = arith.constant 7.812500e-03 : f32
    %13 = vector.broadcast %cst_8 : f32 to vector<256x1xf32>
    %14 = arith.mulf %10, %13 : vector<256x1xf32>
    %15 = arith.mulf %12, %12 : vector<256x1xf32>
    %16 = arith.subf %14, %15 : vector<256x1xf32>
    %cst_9 = arith.constant 0.000000e+00 : f32
    %17 = vector.broadcast %cst_9 : f32 to vector<256x1xf32>
    %18 = arith.maximumf %16, %17 : vector<256x1xf32>
    %cst_10 = arith.constant 9.99999974E-6 : f32
    %19 = vector.broadcast %cst_10 : f32 to vector<256x1xf32>
    %20 = arith.addf %18, %19 : vector<256x1xf32>
    %21 = math.rsqrt %20 : vector<256x1xf32>
    %22 = vector.broadcast %12 : vector<256x1xf32> to vector<256x128xf32>
    %23 = arith.subf %5, %22 : vector<256x128xf32>
    %c0_11 = arith.constant 0 : index
    %c0_12 = arith.constant 0 : index
    %24 = vector.load %arg4[%c0_11, %c0_12] : memref<1x128xf32, #tpu.memory_space<vmem>>, vector<1x128xf32>
    %25 = vector.broadcast %21 : vector<256x1xf32> to vector<256x128xf32>
    %26 = vector.broadcast %24 : vector<1x128xf32> to vector<256x128xf32>
    %27 = arith.mulf %25, %26 : vector<256x128xf32>
    %28 = arith.mulf %23, %27 : vector<256x128xf32>
    %c0_13 = arith.constant 0 : index
    %c0_14 = arith.constant 0 : index
    %29 = vector.load %arg5[%c0_13, %c0_14] : memref<1x128xf32, #tpu.memory_space<vmem>>, vector<1x128xf32>
    %30 = vector.broadcast %29 : vector<1x128xf32> to vector<256x128xf32>
    %31 = arith.addf %28, %30 : vector<256x128xf32>
    %32 = arith.truncf %31 : vector<256x128xf32> to vector<256x128xbf16>
    %c0_15 = arith.constant 0 : index
    %c0_16 = arith.constant 0 : index
    %33 = vector.load %arg6[%c0_15, %c0_16] : memref<256x128xbf16, #tpu.memory_space<vmem>>, vector<256x128xbf16>
    tpu.vector_store %arg6[%c0_15, %c0_16], %32 {strides = array<i32>} : memref<256x128xbf16, #tpu.memory_space<vmem>>, vector<256x128xbf16>,
    return
  }
  func.func @transform_0(%arg0: i32) -> (i32, i32) {
    %c0_i32 = arith.constant 0 : i32
    %c0_i32_0 = arith.constant 0 : i32
    return %arg0, %c0_i32 : i32, i32
  }
  func.func @transform_1(%arg0: i32) -> (i32, i32) {
    %c0_i32 = arith.constant 0 : i32
    %c0_i32_0 = arith.constant 0 : i32
    %c0_i32_1 = arith.constant 0 : i32
    return %c0_i32, %c0_i32_0 : i32, i32
  }
  func.func @transform_2(%arg0: i32) -> (i32, i32) {
    %c0_i32 = arith.constant 0 : i32
    %c0_i32_0 = arith.constant 0 : i32
    %c0_i32_1 = arith.constant 0 : i32
    return %c0_i32, %c0_i32_0 : i32, i32
  }
  func.func @transform_3(%arg0: i32) -> (i32, i32) {
    %c0_i32 = arith.constant 0 : i32
    %c0_i32_0 = arith.constant 0 : i32
    %c0_i32_1 = arith.constant 0 : i32
    return %c0_i32, %c0_i32_0 : i32, i32
  }
  func.func @transform_4(%arg0: i32) -> (i32, i32) {
    %c0_i32 = arith.constant 0 : i32
    %c0_i32_0 = arith.constant 0 : i32
    %c0_i32_1 = arith.constant 0 : i32
    return %c0_i32, %c0_i32_0 : i32, i32
  }
  func.func @transform_5(%arg0: i32) -> (i32, i32) {
    %c0_i32 = arith.constant 0 : i32
    %c0_i32_0 = arith.constant 0 : i32
    return %arg0, %c0_i32 : i32, i32
  }
}

</mosaic_0001>

<llo_original>
// kernel: tpu_custom_call.1
$region0: #{tpu_custom_call.1}
  #allocation0 [shape = 'u32[]', space=smem, size = 0x4, offset = 0x4, fixed_abs, tag = 'smem constant byte address 0x4 - core index']
  #allocation1 [shape = 'u32[144,128]{1,0:T(1,128)}', space=vmem, size = 0x12000, scoped, tag = 'internal scratch']
  %s0 = inlined_call_operand.vmem [shape: bf16[512,147], index: 0, kind: input, shape index: {}]
  %s1 = inlined_call_operand.vmem [shape: bf16[147,128], index: 1, kind: input, shape index: {}]
  %s2 = inlined_call_operand.vmem [shape: f32[1,128], index: 2, kind: input, shape index: {}]
  %s3 = inlined_call_operand.vmem [shape: f32[1,128], index: 3, kind: input, shape index: {}]
  %s4 = inlined_call_operand.vmem [shape: f32[1,128], index: 4, kind: input, shape index: {}]
  %s5 = inlined_call_operand.hbm [shape: bf16[512,128], index: 5, kind: output, shape index: {}]
  %s6 = sld [smem:[#allocation0]]
  $region53: #{tpu_custom_call.1} parent=0
    _
  %s8 = ssub.s32 1, %s6
  %s9 = scalar_select 0, %s8, %s6
  $region1: #{tpu_custom_call.1} parent=0
    #allocation2 [shape = 'u8[131072]{0}', space=vmem, size = 0x20000, scoped, tag = 'output window, operand 0']
    #allocation3 [shape = 's32[2]{0}', space=sflag, size = 0x8, scoped, tag = 'scoped memory for tpu_custom_call.1']
    %10 = vsyncpa [#allocation3], 0
    %s11 = scalar_lea.sflag [#allocation3], 1
    %12 = vsyncpa %s11, 0
    loop: start=0, step=1, limit=4
    $region2: #{tpu_custom_call.1} parent=1 // loop_pre_header
      _
    $region3: #{tpu_custom_call.1} parent=1 // loop_header
      %s14 = sphi 0, %s18
      %p15 = scmp.ge.s32.totalorder %s14, 4
      %s24 = sphi 0, %s26
      %s27 = sphi 0, %s24
      %s28 = sphi 0, %s27
      %s44 = sphi 0, %s28
      %s48 = sphi 0, %s48
      %s50 = sphi 0, %s48
      %s51 = sphi 0, %s50
      %s65 = sphi 0, %s51
      %s69 = sphi 0, %s69
      %s71 = sphi 0, %s69
      %s72 = sphi 0, %s71
      %s86 = sphi 0, %s72
      %s90 = sphi 0, %s90
      %s92 = sphi 0, %s90
      %s93 = sphi 0, %s92
      %s107 = sphi 0, %s93
      %s111 = sphi 0, %s111
      %s113 = sphi 0, %s111
      %s114 = sphi 0, %s113
      %s128 = sphi 0, %s114
      %s134 = sphi 0, %s136
      %s137 = sphi 0, %s134
      %s138 = sphi 0, %s137
      %s154 = sphi 0, %s138
    $region4: #{tpu_custom_call.1} parent=1 // loop_header_branch
      %17 = sbr.rel (%p15) target = $region8
    $region5: #{tpu_custom_call.1} parent=1 // loop_body
      %s19 = ssub.s32 %s14, 1
      %s20 = ssub.s32 %s14, 2
      %s21 = sadd.s32 %s14, 1
      %s22 = ssub.s32 %s14, %s21
      %p23 = scmp.eq.s32.totalorder %s22, 0
      %s25 = sadd.s32 %s24, 1
      %s26 = scalar_select %p23, %s24, %s25
      %p29 = pneg %p23
      %p30 = scmp.eq.s32.totalorder %s14, 1
      %p31 = por %p29, %p30
      %p32 = scmp.ne.s32.totalorder %s24, %s27
      %p33 = scmp.eq.s32.totalorder %s14, 0
      %p34 = por %p32, %p33
      %p35 = scmp.ne.s32.totalorder %s24, %s27
      %p36 = scmp.eq.s32.totalorder %s19, 1
      %p37 = por %p35, %p36
      %p38 = scmp.ne.s32.totalorder %s27, %s28
      %p39 = scmp.eq.s32.totalorder %s19, 0
      %p40 = por %p38, %p39
      %p41 = scmp.ne.s32.totalorder %s27, %s28
      %p42 = scmp.eq.s32.totalorder %s20, 1
      %p43 = por %p41, %p42
      %p45 = scmp.ne.s32.totalorder %s28, %s44
      %p46 = scmp.eq.s32.totalorder %s20, 0
      %p47 = por %p45, %p46
      %s49 = sadd.s32 %s48, 1
      %p52 = scmp.eq.s32.totalorder %s14, 1
      %p53 = scmp.ne.s32.totalorder %s48, %s50
      %p54 = scmp.eq.s32.totalorder %s14, 0
      %p55 = por %p53, %p54
      %p56 = scmp.ne.s32.totalorder %s48, %s50
      %p57 = scmp.eq.s32.totalorder %s19, 1
      %p58 = por %p56, %p57
      %p59 = scmp.ne.s32.totalorder %s50, %s51
      %p60 = scmp.eq.s32.totalorder %s19, 0
      %p61 = por %p59, %p60
      %p62 = scmp.ne.s32.totalorder %s50, %s51
      %p63 = scmp.eq.s32.totalorder %s20, 1
      %p64 = por %p62, %p63
      %p66 = scmp.ne.s32.totalorder %s51, %s65
      %p67 = scmp.eq.s32.totalorder %s20, 0
      %p68 = por %p66, %p67
      %s70 = sadd.s32 %s69, 1
      %p73 = scmp.eq.s32.totalorder %s14, 1
      %p74 = scmp.ne.s32.totalorder %s69, %s71
      %p75 = scmp.eq.s32.totalorder %s14, 0
      %p76 = por %p74, %p75
      %p77 = scmp.ne.s32.totalorder %s69, %s71
      %p78 = scmp.eq.s32.totalorder %s19, 1
      %p79 = por %p77, %p78
      %p80 = scmp.ne.s32.totalorder %s71, %s72
      %p81 = scmp.eq.s32.totalorder %s19, 0
      %p82 = por %p80, %p81
      %p83 = scmp.ne.s32.totalorder %s71, %s72
      %p84 = scmp.eq.s32.totalorder %s20, 1
      %p85 = por %p83, %p84
      %p87 = scmp.ne.s32.totalorder %s72, %s86
      %p88 = scmp.eq.s32.totalorder %s20, 0
      %p89 = por %p87, %p88
      %s91 = sadd.s32 %s90, 1
      %p94 = scmp.eq.s32.totalorder %s14, 1
      %p95 = scmp.ne.s32.totalorder %s90, %s92
      %p96 = scmp.eq.s32.totalorder %s14, 0
      %p97 = por %p95, %p96
      %p98 = scmp.ne.s32.totalorder %s90, %s92
      %p99 = scmp.eq.s32.totalorder %s19, 1
      %p100 = por %p98, %p99
      %p101 = scmp.ne.s32.totalorder %s92, %s93
      %p102 = scmp.eq.s32.totalorder %s19, 0
      %p103 = por %p101, %p102
      %p104 = scmp.ne.s32.totalorder %s92, %s93
      %p105 = scmp.eq.s32.totalorder %s20, 1
      %p106 = por %p104, %p105
      %p108 = scmp.ne.s32.totalorder %s93, %s107
      %p109 = scmp.eq.s32.totalorder %s20, 0
      %p110 = por %p108, %p109
      %s112 = sadd.s32 %s111, 1
      %p115 = scmp.eq.s32.totalorder %s14, 1
      %p116 = scmp.ne.s32.totalorder %s111, %s113
      %p117 = scmp.eq.s32.totalorder %s14, 0
      %p118 = por %p116, %p117
      %p119 = scmp.ne.s32.totalorder %s111, %s113
      %p120 = scmp.eq.s32.totalorder %s19, 1
      %p121 = por %p119, %p120
      %p122 = scmp.ne.s32.totalorder %s113, %s114
      %p123 = scmp.eq.s32.totalorder %s19, 0
      %p124 = por %p122, %p123
      %p125 = scmp.ne.s32.totalorder %s113, %s114
      %p126 = scmp.eq.s32.totalorder %s20, 1
      %p127 = por %p125, %p126
      %p129 = scmp.ne.s32.totalorder %s114, %s128
      %p130 = scmp.eq.s32.totalorder %s20, 0
      %p131 = por %p129, %p130
      %s132 = ssub.s32 %s14, %s21
      %p133 = scmp.eq.s32.totalorder %s132, 0
      %s135 = sadd.s32 %s134, 1
      %s136 = scalar_select %p133, %s134, %s135
      %p139 = pneg %p133
      %p140 = scmp.eq.s32.totalorder %s14, 1
      %p141 = por %p139, %p140
      %p142 = scmp.ne.s32.totalorder %s134, %s137
      %p143 = scmp.eq.s32.totalorder %s14, 0
      %p144 = por %p142, %p143
      %p145 = scmp.ne.s32.totalorder %s134, %s137
      %p146 = scmp.eq.s32.totalorder %s19, 1
      %p147 = por %p145, %p146
      %p148 = scmp.ne.s32.totalorder %s137, %s138
      %p149 = scmp.eq.s32.totalorder %s19, 0
      %p150 = por %p148, %p149
      %p151 = scmp.ne.s32.totalorder %s137, %s138
      %p152 = scmp.eq.s32.totalorder %s20, 1
      %p153 = por %p151, %p152
      %p155 = scmp.ne.s32.totalorder %s138, %s154
      %p156 = scmp.eq.s32.totalorder %s20, 0
      %p157 = por %p155, %p156
      %p158 = scmp.le.s32.totalorder 1, %s14
      %p159 = scmp.lt.s32.totalorder %s14, 3
      %p160 = pnand %p158, %p159
      %p161 = pneg %p160
      // Predicated region
      $region9: #{tpu_custom_call.1} parent=5 // pred_check
        _
      $region10: #{tpu_custom_call.1} parent=5 // pred_check_branch
        %163 = sbr.rel (%p160) target = $region12
      $region11: #{tpu_custom_call.1} parent=5 // pred_region
        %s164 = ssub.s32 %s14, 1
        // Predicated region
        $region13: #{tpu_custom_call.1} parent=11 // pred_check
          %p165 = pneg %p61
        $region14: #{tpu_custom_call.1} parent=11 // pred_check_branch
          %167 = sbr.rel (%p165) target = $region16
        $region15: #{tpu_custom_call.1} parent=11 // pred_region
          _
        $region16: #{tpu_custom_call.1} parent=11 // pred_fallthru
          _
        // Predicated region
        $region17: #{tpu_custom_call.1} parent=11 // pred_check
          %p168 = pneg %p82
        $region18: #{tpu_custom_call.1} parent=11 // pred_check_branch
          %170 = sbr.rel (%p168) target = $region20
        $region19: #{tpu_custom_call.1} parent=11 // pred_region
          _
        $region20: #{tpu_custom_call.1} parent=11 // pred_fallthru
          _
        // Predicated region
        $region21: #{tpu_custom_call.1} parent=11 // pred_check
          %p171 = pneg %p103
        $region22: #{tpu_custom_call.1} parent=11 // pred_check_branch
          %173 = sbr.rel (%p171) target = $region24
        $region23: #{tpu_custom_call.1} parent=11 // pred_region
          _
        $region24: #{tpu_custom_call.1} parent=11 // pred_fallthru
          _
        // Predicated region
        $region25: #{tpu_custom_call.1} parent=11 // pred_check
          %p174 = pneg %p124
        $region26: #{tpu_custom_call.1} parent=11 // pred_check_branch
          %176 = sbr.rel (%p174) target = $region28
        $region27: #{tpu_custom_call.1} parent=11 // pred_region
          _
        $region28: #{tpu_custom_call.1} parent=11 // pred_fallthru
          _
      $region12: #{tpu_custom_call.1} parent=5 // pred_fallthru
        _
      %p177 = scmp.lt.s32.totalorder %s14, 2
      // Predicated region
      $region29: #{tpu_custom_call.1} parent=5 // pred_check
        %p178 = pneg %p177
      $region30: #{tpu_custom_call.1} parent=5 // pred_check_branch
        %180 = sbr.rel (%p178) target = $region32
      $region31: #{tpu_custom_call.1} parent=5 // pred_region
        // Predicated region
        $region33: #{tpu_custom_call.1} parent=31 // pred_check
          %p181 = pneg %p34
        $region34: #{tpu_custom_call.1} parent=31 // pred_check_branch
          %183 = sbr.rel (%p181) target = $region36
        $region35: #{tpu_custom_call.1} parent=31 // pred_region
          %s184 = smul.u32 32, %s14
          %p185 = scmp.lt.s32.totalorder %s184, 63
          %s186 = scalar_select %p185, %s184, 63
          %s187 = smul.addr %s186, 2
          %s188 = smul.addr %s187, 4
          %s189 = scalar_lea.vmem %s0, %s188
          %s190 = smul.u32 32, %s14
        $region36: #{tpu_custom_call.1} parent=31 // pred_fallthru
          _
      $region32: #{tpu_custom_call.1} parent=5 // pred_fallthru
        _
      %p191 = scmp.le.s32.totalorder 1, %s14
      %p192 = scmp.lt.s32.totalorder %s14, 3
      %p193 = pnand %p191, %p192
      %p194 = pneg %p193
      // Predicated region
      $region37: #{tpu_custom_call.1} parent=5 // pred_check
        _
      $region38: #{tpu_custom_call.1} parent=5 // pred_check_branch
        %196 = sbr.rel (%p193) target = $region40
      $region39: #{tpu_custom_call.1} parent=5 // pred_region
        %s197 = ssub.s32 %s14, 1
        %s198 = smul.u32 32, %s19
        %p199 = scmp.lt.s32.totalorder %s198, 63
        %s200 = scalar_select %p199, %s198, 63
        %s201 = smul.addr %s200, 2
        %s202 = smul.addr %s201, 4
        %s203 = scalar_lea.vmem %s0, %s202
        %p204 = pneg %p40
        %p205 = pneg %p37
        %p206 = pneg %p61
        %p207 = pneg %p58
        %p208 = pneg %p82
        %p209 = pneg %p79
        %p210 = pneg %p103
        %p211 = pneg %p100
        %p212 = pneg %p124
        %p213 = pneg %p121
        %p214 = pneg %p150
        %p215 = pneg %p147
        %s216 = sand.u32 %s137, 1
        %s217 = scalar_lea.sflag [#allocation3], %s216
        %s218 = sand.u32 %s137, 1
        %s219 = smul.addr %s218, 128
        %s220 = scalar_lea.vmem [#allocation2], %s219
        %s221 = smul.u32 32, %s19
        %p222 = scmp.lt.s32.totalorder %s221, 63
        %s223 = scalar_select %p222, %s221, 63
        %s224 = smul.addr %s223, 2
        %s225 = smul.addr %s224, 4
        %s226 = scalar_lea.vmem %s0, %s225
        %s227 = smul.u32 32, %s19
        %s228 = smul.u32 32, %s19
        %v230 = vld [vmem:[%s226] sm:$0xff]
        %v231 = vld [vmem:[%s226 + $0x8] sm:$0xff]
        %v232 = vld [vmem:[%s226 + $0x10] sm:$0xff]
        %v233 = vld [vmem:[%s226 + $0x18] sm:$0xff]
        %v234 = vld [vmem:[%s226 + $0x20] sm:$0xff]
        %v235 = vld [vmem:[%s226 + $0x28] sm:$0xff]
        %v236 = vld [vmem:[%s226 + $0x30] sm:$0xff]
        %v237 = vld [vmem:[%s226 + $0x38] sm:$0xff]
        %v238 = vld [vmem:[%s226 + $0x40] sm:$0xff]
        %v239 = vld [vmem:[%s226 + $0x48] sm:$0xff]
        %v240 = vld [vmem:[%s226 + $0x50] sm:$0xff]
        %v241 = vld [vmem:[%s226 + $0x58] sm:$0xff]
        %v242 = vld [vmem:[%s226 + $0x60] sm:$0xff]
        %v243 = vld [vmem:[%s226 + $0x68] sm:$0xff]
        %v244 = vld [vmem:[%s226 + $0x70] sm:$0xff]
        %v245 = vld [vmem:[%s226 + $0x78] sm:$0xff]
        %v246 = vld [vmem:[%s226 + $0x80] sm:$0xff]
        %v247 = vld [vmem:[%s226 + $0x88] sm:$0xff]
        %v248 = vld [vmem:[%s226 + $0x90] sm:$0xff]
        %v249 = vld [vmem:[%s226 + $0x98] sm:$0xff]
        %v250 = vld [vmem:[%s226 + $0xa0] sm:$0xff]
        %v251 = vld [vmem:[%s226 + $0xa8] sm:$0xff]
        %v252 = vld [vmem:[%s226 + $0xb0] sm:$0xff]
        %v253 = vld [vmem:[%s226 + $0xb8] sm:$0xff]
        %v254 = vld [vmem:[%s226 + $0xc0] sm:$0xff]
        %v255 = vld [vmem:[%s226 + $0xc8] sm:$0xff]
        %v256 = vld [vmem:[%s226 + $0xd0] sm:$0xff]
        %v257 = vld [vmem:[%s226 + $0xd8] sm:$0xff]
        %v258 = vld [vmem:[%s226 + $0xe0] sm:$0xff]
        %v259 = vld [vmem:[%s226 + $0xe8] sm:$0xff]
        %v260 = vld [vmem:[%s226 + $0xf0] sm:$0xff]
        %v261 = vld [vmem:[%s226 + $0xf8] sm:$0xff]
        %v262 = vld [vmem:[%s1] sm:$0xf]
        %v263 = vld [vmem:[%s1 + $0x4] sm:$0xf]
        %v264 = vld [vmem:[%s1 + $0x8] sm:$0xf]
        %v265 = vld [vmem:[%s1 + $0xc] sm:$0xf]
        %v266 = vld [vmem:[%s1 + $0x10] sm:$0xf]
        %v267 = vld [vmem:[%s1 + $0x14] sm:$0xf]
        %v268 = vld [vmem:[%s1 + $0x18] sm:$0xf]
        %v269 = vld [vmem:[%s1 + $0x1c] sm:$0xf]
        %v270 = vld [vmem:[%s1 + $0x20] sm:$0xf]
        %v271 = vld [vmem:[%s1 + $0x24] sm:$0xf]
        %v272 = vld [vmem:[%s1 + $0x28] sm:$0xf]
        %v273 = vld [vmem:[%s1 + $0x2c] sm:$0xf]
        %v274 = vld [vmem:[%s1 + $0x30] sm:$0xf]
        %v275 = vld [vmem:[%s1 + $0x34] sm:$0xf]
        %v276 = vld [vmem:[%s1 + $0x38] sm:$0xf]
        %v277 = vld [vmem:[%s1 + $0x3c] sm:$0xf]
        %v278 = vld [vmem:[%s1 + $0x40] sm:$0xf]
        %v279 = vld [vmem:[%s1 + $0x44] sm:$0xf]
        %v280 = vld [vmem:[%s1 + $0x48] sm:$0x3]
        %v281 = vld [vmem:[%s2] sm:$0x1]
        %v283 = vlaneseq
        %v284 = vshrl.u32 %v283, 7
        %v285 = vsub.s32 0, %v284
        %v286 = vrot.slane %v281, %v285
        %v320 = vunpack.c.l.b16 %v230
        %v321 = vunpack.c.h.b16 %v230
        %v322 = vunpack.c.l.b16 %v231
        %v323 = vunpack.c.h.b16 %v231
        %v324 = vunpack.c.l.b16 %v232
        %v325 = vunpack.c.h.b16 %v232
        %v326 = vunpack.c.l.b16 %v233
        %v327 = vunpack.c.h.b16 %v233
        %v328 = vunpack.c.l.b16 %v234
        %v329 = vunpack.c.h.b16 %v234
        %v330 = vunpack.c.l.b16 %v235
        %v331 = vunpack.c.h.b16 %v235
        %v332 = vunpack.c.l.b16 %v236
        %v333 = vunpack.c.h.b16 %v236
        %v334 = vunpack.c.l.b16 %v237
        %v335 = vunpack.c.h.b16 %v237
        %v336 = vunpack.c.l.b16 %v238
        %v337 = vunpack.c.h.b16 %v238
        %v338 = vunpack.c.l.b16 %v239
        %v339 = vunpack.c.h.b16 %v239
        %v340 = vunpack.c.l.b16 %v240
        %v341 = vunpack.c.h.b16 %v240
        %v342 = vunpack.c.l.b16 %v241
        %v343 = vunpack.c.h.b16 %v241
        %v344 = vunpack.c.l.b16 %v242
        %v345 = vunpack.c.h.b16 %v242
        %v346 = vunpack.c.l.b16 %v243
        %v347 = vunpack.c.h.b16 %v243
        %v348 = vunpack.c.l.b16 %v244
        %v349 = vunpack.c.h.b16 %v244
        %v350 = vunpack.c.l.b16 %v245
        %v351 = vunpack.c.h.b16 %v245
        %v352 = vunpack.c.l.b16 %v246
        %v353 = vunpack.c.h.b16 %v246
        %v354 = vunpack.c.l.b16 %v247
        %v355 = vunpack.c.h.b16 %v247
        %v356 = vunpack.c.l.b16 %v248
        %v357 = vunpack.c.h.b16 %v248
        %v358 = vunpack.c.l.b16 %v249
        %v359 = vunpack.c.h.b16 %v249
        %v360 = vunpack.c.l.b16 %v250
        %v361 = vunpack.c.h.b16 %v250
        %v362 = vunpack.c.l.b16 %v251
        %v363 = vunpack.c.h.b16 %v251
        %v364 = vunpack.c.l.b16 %v252
        %v365 = vunpack.c.h.b16 %v252
        %v366 = vunpack.c.l.b16 %v253
        %v367 = vunpack.c.h.b16 %v253
        %v368 = vunpack.c.l.b16 %v254
        %v369 = vunpack.c.h.b16 %v254
        %v370 = vunpack.c.l.b16 %v255
        %v371 = vunpack.c.h.b16 %v255
        %v372 = vunpack.c.l.b16 %v256
        %v373 = vunpack.c.h.b16 %v256
        %v374 = vunpack.c.l.b16 %v257
        %v375 = vunpack.c.h.b16 %v257
        %v376 = vunpack.c.l.b16 %v258
        %v377 = vunpack.c.h.b16 %v258
        %v378 = vunpack.c.l.b16 %v259
        %v379 = vunpack.c.h.b16 %v259
        %v380 = vunpack.c.l.b16 %v260
        %v381 = vunpack.c.h.b16 %v260
        %v382 = vunpack.c.l.b16 %v261
        %v383 = vunpack.c.h.b16 %v261
        %v384 = vpack.c.b16 %v322, %v320
        %v385 = vpack.c.b16 %v323, %v321
        %v386 = vpack.c.b16 %v326, %v324
        %v387 = vpack.c.b16 %v327, %v325
        %v388 = vpack.c.b16 %v330, %v328
        %v389 = vpack.c.b16 %v331, %v329
        %v390 = vpack.c.b16 %v334, %v332
        %v391 = vpack.c.b16 %v335, %v333
        %v392 = vpack.c.b16 %v338, %v336
        %v393 = vpack.c.b16 %v339, %v337
        %v394 = vpack.c.b16 %v342, %v340
        %v395 = vpack.c.b16 %v343, %v341
        %v396 = vpack.c.b16 %v346, %v344
        %v397 = vpack.c.b16 %v347, %v345
        %v398 = vpack.c.b16 %v350, %v348
        %v399 = vpack.c.b16 %v351, %v349
        %v400 = vpack.c.b16 %v354, %v352
        %v401 = vpack.c.b16 %v355, %v353
        %v402 = vpack.c.b16 %v358, %v356
        %v403 = vpack.c.b16 %v359, %v357
        %v404 = vpack.c.b16 %v362, %v360
        %v405 = vpack.c.b16 %v363, %v361
        %v406 = vpack.c.b16 %v366, %v364
        %v407 = vpack.c.b16 %v367, %v365
        %v408 = vpack.c.b16 %v370, %v368
        %v409 = vpack.c.b16 %v371, %v369
        %v410 = vpack.c.b16 %v374, %v372
        %v411 = vpack.c.b16 %v375, %v373
        %v412 = vpack.c.b16 %v378, %v376
        %v413 = vpack.c.b16 %v379, %v377
        %v414 = vpack.c.b16 %v382, %v380
        %v415 = vpack.c.b16 %v383, %v381
        %v451 = vunpack.c.l.b16 %v262
        %v452 = vunpack.c.l.b16 %v263
        %v453 = vunpack.c.l.b16 %v264
        %v454 = vunpack.c.l.b16 %v265
        %v455 = vunpack.c.l.b16 %v266
        %v456 = vunpack.c.l.b16 %v267
        %v457 = vunpack.c.l.b16 %v268
        %v458 = vunpack.c.l.b16 %v269
        %v459 = vunpack.c.l.b16 %v270
        %v460 = vunpack.c.l.b16 %v271
        %v461 = vunpack.c.l.b16 %v272
        %v462 = vunpack.c.l.b16 %v273
        %v463 = vunpack.c.l.b16 %v274
        %v464 = vunpack.c.l.b16 %v275
        %v465 = vunpack.c.l.b16 %v276
        %v466 = vunpack.c.l.b16 %v277
        %v467 = vunpack.c.l.b16 %v278
        %v468 = vunpack.c.l.b16 %v279
        %v469 = vunpack.c.l.b16 %v280
        %v470 = vpack.c.b16 %v452, %v451
        %v471 = vpack.c.b16 %v454, %v453
        %v472 = vpack.c.b16 %v456, %v455
        %v473 = vpack.c.b16 %v458, %v457
        %v474 = vpack.c.b16 %v460, %v459
        %v475 = vpack.c.b16 %v462, %v461
        %v476 = vpack.c.b16 %v464, %v463
        %v477 = vpack.c.b16 %v466, %v465
        %v478 = vpack.c.b16 %v468, %v467
        %v479 = vpack.c.b16 %v469, %v469
        %vm489 = vcmask 154624
        %v491 = vsel %vm489, %v385, 0
        %v494 = vsel %vm489, %v387, 0
        %v497 = vsel %vm489, %v389, 0
        %v500 = vsel %vm489, %v391, 0
        %v503 = vsel %vm489, %v393, 0
        %v506 = vsel %vm489, %v395, 0
        %v509 = vsel %vm489, %v397, 0
        %v512 = vsel %vm489, %v399, 0
        %v515 = vsel %vm489, %v401, 0
        %v518 = vsel %vm489, %v403, 0
        %v521 = vsel %vm489, %v405, 0
        %v524 = vsel %vm489, %v407, 0
        %v527 = vsel %vm489, %v409, 0
        %v530 = vsel %vm489, %v411, 0
        %v533 = vsel %vm489, %v413, 0
        %v536 = vsel %vm489, %v415, 0
        %vm538 = vcmask 1040384
        %vm539 = vcmask 1041408
        %v540 = vsel %vm538, 4294967295, 65535
        %v541 = vsel %vm539, %v540, 0
        %v543 = vand.u32 %v479, %v541
        %545 = vmatprep.subr.bf16.mxu0 0
        %546 = vmatpush1.bf16.msra.mxu0 %v477
        %547 = vmatprep.subr.bf16.mxu0 0
        %548 = vmatpush1.bf16.msra.mxu0 %v476
        %549 = vmatprep.subr.bf16.mxu0 0
        %550 = vmatpush1.bf16.msra.mxu0 %v475
        %551 = vmatprep.subr.bf16.mxu0 0
        %552 = vmatpush1.bf16.msra.mxu0 %v474
        %553 = vmatprep.subr.bf16.mxu0 0
        %554 = vmatpush1.bf16.msra.mxu0 %v473
        %555 = vmatprep.subr.bf16.mxu0 0
        %556 = vmatpush1.bf16.msra.mxu0 %v472
        %557 = vmatprep.subr.bf16.mxu0 0
        %558 = vmatpush1.bf16.msra.mxu0 %v471
        %559 = vmatprep.subr.bf16.mxu0 0
        %560 = vmatpush1.bf16.msra.mxu0 %v470
        %561 = vmatprep.subr.bf16.mxu0 0
        %562 = vmatpush2.bf16.msra.mxu0 0
        %563 = vmatprep.subr.bf16.mxu0 0
        %564 = vmatpush2.bf16.msra.mxu0 0
        %565 = vmatprep.subr.bf16.mxu0 0
        %566 = vmatpush2.bf16.msra.mxu0 0
        %567 = vmatprep.subr.bf16.mxu0 0
        %568 = vmatpush2.bf16.msra.mxu0 0
        %569 = vmatprep.subr.bf16.mxu0 0
        %570 = vmatpush2.bf16.msra.mxu0 0
        %571 = vmatprep.subr.bf16.mxu0 0
        %572 = vmatpush2.bf16.msra.mxu0 0
        %573 = vmatprep.subr.bf16.mxu0 0
        %574 = vmatpush2.bf16.msra.mxu0 %v543
        %575 = vmatprep.subr.bf16.mxu0 0
        %576 = vmatpush2.bf16.msra.mxu0 %v478
        %577 = vmatprep.mubr.bf16.mxu0 %v491
        %578 = vmatmul.mubr.bf16.gmra.mxu0 %v384
        %v579 = vpop.f32.mrf.mxu0
        %v580 = vadd.f32 %v286, %v579
        %v581 = vpop.f32.mrf.mxu0
        %v582 = vpop.f32.mrf.mxu0
        %v583 = vadd.f32 %v286, %v582
        %v584 = vpop.f32.mrf.mxu0
        %585 = vmatprep.mubr.bf16.mxu0 %v494
        %586 = vmatmul.mubr.bf16.gmra.mxu0 %v386
        %v587 = vpop.f32.mrf.mxu0
        %v588 = vadd.f32 %v286, %v587
        %v589 = vpop.f32.mrf.mxu0
        %v590 = vpop.f32.mrf.mxu0
        %v591 = vadd.f32 %v286, %v590
        %v592 = vpop.f32.mrf.mxu0
        %593 = vmatprep.mubr.bf16.mxu0 %v497
        %594 = vmatmul.mubr.bf16.gmra.mxu0 %v388
        %v595 = vpop.f32.mrf.mxu0
        %v596 = vadd.f32 %v286, %v595
        %v597 = vpop.f32.mrf.mxu0
        %v598 = vpop.f32.mrf.mxu0
        %v599 = vadd.f32 %v286, %v598
        %v600 = vpop.f32.mrf.mxu0
        %601 = vmatprep.mubr.bf16.mxu0 %v500
        %602 = vmatmul.mubr.bf16.gmra.mxu0 %v390
        %v603 = vpop.f32.mrf.mxu0
        %v604 = vadd.f32 %v286, %v603
        %v605 = vpop.f32.mrf.mxu0
        %v606 = vpop.f32.mrf.mxu0
        %v607 = vadd.f32 %v286, %v606
        %v608 = vpop.f32.mrf.mxu0
        %609 = vmatprep.mubr.bf16.mxu0 %v503
        %610 = vmatmul.mubr.bf16.gmra.mxu0 %v392
        %v611 = vpop.f32.mrf.mxu0
        %v612 = vadd.f32 %v286, %v611
        %v613 = vpop.f32.mrf.mxu0
        %v614 = vpop.f32.mrf.mxu0
        %v615 = vadd.f32 %v286, %v614
        %v616 = vpop.f32.mrf.mxu0
        %617 = vmatprep.mubr.bf16.mxu0 %v506
        %618 = vmatmul.mubr.bf16.gmra.mxu0 %v394
        %v619 = vpop.f32.mrf.mxu0
        %v620 = vadd.f32 %v286, %v619
        %v621 = vpop.f32.mrf.mxu0
        %v622 = vpop.f32.mrf.mxu0
        %v623 = vadd.f32 %v286, %v622
        %v624 = vpop.f32.mrf.mxu0
        %625 = vmatprep.mubr.bf16.mxu0 %v509
        %626 = vmatmul.mubr.bf16.gmra.mxu0 %v396
        %v627 = vpop.f32.mrf.mxu0
        %v628 = vadd.f32 %v286, %v627
        %v629 = vpop.f32.mrf.mxu0
        %v630 = vpop.f32.mrf.mxu0
        %v631 = vadd.f32 %v286, %v630
        %v632 = vpop.f32.mrf.mxu0
        %633 = vmatprep.mubr.bf16.mxu0 %v512
        %634 = vmatmul.mubr.bf16.gmra.mxu0 %v398
        %v635 = vpop.f32.mrf.mxu0
        %v636 = vadd.f32 %v286, %v635
        %v637 = vpop.f32.mrf.mxu0
        %v638 = vpop.f32.mrf.mxu0
        %v639 = vadd.f32 %v286, %v638
        %v640 = vpop.f32.mrf.mxu0
        %641 = vmatprep.mubr.bf16.mxu0 %v515
        %642 = vmatmul.mubr.bf16.gmra.mxu0 %v400
        %v643 = vpop.f32.mrf.mxu0
        %v644 = vadd.f32 %v286, %v643
        %v645 = vpop.f32.mrf.mxu0
        %v646 = vpop.f32.mrf.mxu0
        %v647 = vadd.f32 %v286, %v646
        %v648 = vpop.f32.mrf.mxu0
        %649 = vmatprep.mubr.bf16.mxu0 %v518
        %650 = vmatmul.mubr.bf16.gmra.mxu0 %v402
        %v651 = vpop.f32.mrf.mxu0
        %v652 = vadd.f32 %v286, %v651
        %v653 = vpop.f32.mrf.mxu0
        %v654 = vpop.f32.mrf.mxu0
        %v655 = vadd.f32 %v286, %v654
        %v656 = vpop.f32.mrf.mxu0
        %657 = vmatprep.mubr.bf16.mxu0 %v521
        %658 = vmatmul.mubr.bf16.gmra.mxu0 %v404
        %v659 = vpop.f32.mrf.mxu0
        %v660 = vadd.f32 %v286, %v659
        %v661 = vpop.f32.mrf.mxu0
        %v662 = vpop.f32.mrf.mxu0
        %v663 = vadd.f32 %v286, %v662
        %v664 = vpop.f32.mrf.mxu0
        %665 = vmatprep.mubr.bf16.mxu0 %v524
        %666 = vmatmul.mubr.bf16.gmra.mxu0 %v406
        %v667 = vpop.f32.mrf.mxu0
        %v668 = vadd.f32 %v286, %v667
        %v669 = vpop.f32.mrf.mxu0
        %v670 = vpop.f32.mrf.mxu0
        %v671 = vadd.f32 %v286, %v670
        %v672 = vpop.f32.mrf.mxu0
        %673 = vmatprep.mubr.bf16.mxu0 %v527
        %674 = vmatmul.mubr.bf16.gmra.mxu0 %v408
        %v675 = vpop.f32.mrf.mxu0
        %v676 = vadd.f32 %v286, %v675
        %v677 = vpop.f32.mrf.mxu0
        %v678 = vpop.f32.mrf.mxu0
        %v679 = vadd.f32 %v286, %v678
        %v680 = vpop.f32.mrf.mxu0
        %681 = vmatprep.mubr.bf16.mxu0 %v530
        %682 = vmatmul.mubr.bf16.gmra.mxu0 %v410
        %v683 = vpop.f32.mrf.mxu0
        %v684 = vadd.f32 %v286, %v683
        %v685 = vpop.f32.mrf.mxu0
        %v686 = vpop.f32.mrf.mxu0
        %v687 = vadd.f32 %v286, %v686
        %v688 = vpop.f32.mrf.mxu0
        %689 = vmatprep.mubr.bf16.mxu0 %v533
        %690 = vmatmul.mubr.bf16.gmra.mxu0 %v412
        %v691 = vpop.f32.mrf.mxu0
        %v692 = vadd.f32 %v286, %v691
        %v693 = vpop.f32.mrf.mxu0
        %v694 = vpop.f32.mrf.mxu0
        %v695 = vadd.f32 %v286, %v694
        %v696 = vpop.f32.mrf.mxu0
        %697 = vmatprep.mubr.bf16.mxu0 %v536
        %698 = vmatmul.mubr.bf16.gmra.mxu0 %v414
        %v699 = vpop.f32.mrf.mxu0
        %v700 = vadd.f32 %v286, %v699
        %v701 = vpop.f32.mrf.mxu0
        %v702 = vpop.f32.mrf.mxu0
        %v703 = vadd.f32 %v286, %v702
        %v704 = vpop.f32.mrf.mxu0
        %705 = vdwg.mxu0
        %706 = vadd.xlane.f32.xlu0 %v580
        %v707 = vpop.xlane.xlu0 %706
        %708 = vadd.xlane.f32.xlu0 %v583
        %v709 = vpop.xlane.xlu0 %708
        %710 = vadd.xlane.f32.xlu0 %v588
        %v711 = vpop.xlane.xlu0 %710
        %712 = vadd.xlane.f32.xlu0 %v591
        %v713 = vpop.xlane.xlu0 %712
        %714 = vadd.xlane.f32.xlu0 %v596
        %v715 = vpop.xlane.xlu0 %714
        %716 = vadd.xlane.f32.xlu0 %v599
        %v717 = vpop.xlane.xlu0 %716
        %718 = vadd.xlane.f32.xlu0 %v604
        %v719 = vpop.xlane.xlu0 %718
        %720 = vadd.xlane.f32.xlu0 %v607
        %v721 = vpop.xlane.xlu0 %720
        %722 = vadd.xlane.f32.xlu0 %v612
        %v723 = vpop.xlane.xlu0 %722
        %724 = vadd.xlane.f32.xlu0 %v615
        %v725 = vpop.xlane.xlu0 %724
        %726 = vadd.xlane.f32.xlu0 %v620
        %v727 = vpop.xlane.xlu0 %726
        %728 = vadd.xlane.f32.xlu0 %v623
        %v729 = vpop.xlane.xlu0 %728
        %730 = vadd.xlane.f32.xlu0 %v628
        %v731 = vpop.xlane.xlu0 %730
        %732 = vadd.xlane.f32.xlu0 %v631
        %v733 = vpop.xlane.xlu0 %732
        %734 = vadd.xlane.f32.xlu0 %v636
        %v735 = vpop.xlane.xlu0 %734
        %736 = vadd.xlane.f32.xlu0 %v639
        %v737 = vpop.xlane.xlu0 %736
        %738 = vadd.xlane.f32.xlu0 %v644
        %v739 = vpop.xlane.xlu0 %738
        %740 = vadd.xlane.f32.xlu0 %v647
        %v741 = vpop.xlane.xlu0 %740
        %742 = vadd.xlane.f32.xlu0 %v652
        %v743 = vpop.xlane.xlu0 %742
        %744 = vadd.xlane.f32.xlu0 %v655
        %v745 = vpop.xlane.xlu0 %744
        %746 = vadd.xlane.f32.xlu0 %v660
        %v747 = vpop.xlane.xlu0 %746
        %748 = vadd.xlane.f32.xlu0 %v663
        %v749 = vpop.xlane.xlu0 %748
        %750 = vadd.xlane.f32.xlu0 %v668
        %v751 = vpop.xlane.xlu0 %750
        %752 = vadd.xlane.f32.xlu0 %v671
        %v753 = vpop.xlane.xlu0 %752
        %754 = vadd.xlane.f32.xlu0 %v676
        %v755 = vpop.xlane.xlu0 %754
        %756 = vadd.xlane.f32.xlu0 %v679
        %v757 = vpop.xlane.xlu0 %756
        %758 = vadd.xlane.f32.xlu0 %v684
        %v759 = vpop.xlane.xlu0 %758
        %760 = vadd.xlane.f32.xlu0 %v687
        %v761 = vpop.xlane.xlu0 %760
        %762 = vadd.xlane.f32.xlu0 %v692
        %v763 = vpop.xlane.xlu0 %762
        %764 = vadd.xlane.f32.xlu0 %v695
        %v765 = vpop.xlane.xlu0 %764
        %766 = vadd.xlane.f32.xlu0 %v700
        %v767 = vpop.xlane.xlu0 %766
        %768 = vadd.xlane.f32.xlu0 %v703
        %v769 = vpop.xlane.xlu0 %768
        %v770 = vmul.f32 %v580, %v580
        %v771 = vmul.f32 %v583, %v583
        %v772 = vmul.f32 %v588, %v588
        %v773 = vmul.f32 %v591, %v591
        %v774 = vmul.f32 %v596, %v596
        %v775 = vmul.f32 %v599, %v599
        %v776 = vmul.f32 %v604, %v604
        %v777 = vmul.f32 %v607, %v607
        %v778 = vmul.f32 %v612, %v612
        %v779 = vmul.f32 %v615, %v615
        %v780 = vmul.f32 %v620, %v620
        %v781 = vmul.f32 %v623, %v623
        %v782 = vmul.f32 %v628, %v628
        %v783 = vmul.f32 %v631, %v631
        %v784 = vmul.f32 %v636, %v636
        %v785 = vmul.f32 %v639, %v639
        %v786 = vmul.f32 %v644, %v644
        %v787 = vmul.f32 %v647, %v647
        %v788 = vmul.f32 %v652, %v652
        %v789 = vmul.f32 %v655, %v655
        %v790 = vmul.f32 %v660, %v660
        %v791 = vmul.f32 %v663, %v663
        %v792 = vmul.f32 %v668, %v668
        %v793 = vmul.f32 %v671, %v671
        %v794 = vmul.f32 %v676, %v676
        %v795 = vmul.f32 %v679, %v679
        %v796 = vmul.f32 %v684, %v684
        %v797 = vmul.f32 %v687, %v687
        %v798 = vmul.f32 %v692, %v692
        %v799 = vmul.f32 %v695, %v695
        %v800 = vmul.f32 %v700, %v700
        %v801 = vmul.f32 %v703, %v703
        %802 = vadd.xlane.f32.xlu0 %v770
        %v803 = vpop.xlane.xlu0 %802
        %804 = vadd.xlane.f32.xlu0 %v771
        %v805 = vpop.xlane.xlu0 %804
        %806 = vadd.xlane.f32.xlu0 %v772
        %v807 = vpop.xlane.xlu0 %806
        %808 = vadd.xlane.f32.xlu0 %v773
        %v809 = vpop.xlane.xlu0 %808
        %810 = vadd.xlane.f32.xlu0 %v774
        %v811 = vpop.xlane.xlu0 %810
        %812 = vadd.xlane.f32.xlu0 %v775
        %v813 = vpop.xlane.xlu0 %812
        %814 = vadd.xlane.f32.xlu0 %v776
        %v815 = vpop.xlane.xlu0 %814
        %816 = vadd.xlane.f32.xlu0 %v777
        %v817 = vpop.xlane.xlu0 %816
        %818 = vadd.xlane.f32.xlu0 %v778
        %v819 = vpop.xlane.xlu0 %818
        %820 = vadd.xlane.f32.xlu0 %v779
        %v821 = vpop.xlane.xlu0 %820
        %822 = vadd.xlane.f32.xlu0 %v780
        %v823 = vpop.xlane.xlu0 %822
        %824 = vadd.xlane.f32.xlu0 %v781
        %v825 = vpop.xlane.xlu0 %824
        %826 = vadd.xlane.f32.xlu0 %v782
        %v827 = vpop.xlane.xlu0 %826
        %828 = vadd.xlane.f32.xlu0 %v783
        %v829 = vpop.xlane.xlu0 %828
        %830 = vadd.xlane.f32.xlu0 %v784
        %v831 = vpop.xlane.xlu0 %830
        %832 = vadd.xlane.f32.xlu0 %v785
        %v833 = vpop.xlane.xlu0 %832
        %834 = vadd.xlane.f32.xlu0 %v786
        %v835 = vpop.xlane.xlu0 %834
        %836 = vadd.xlane.f32.xlu0 %v787
        %v837 = vpop.xlane.xlu0 %836
        %838 = vadd.xlane.f32.xlu0 %v788
        %v839 = vpop.xlane.xlu0 %838
        %840 = vadd.xlane.f32.xlu0 %v789
        %v841 = vpop.xlane.xlu0 %840
        %842 = vadd.xlane.f32.xlu0 %v790
        %v843 = vpop.xlane.xlu0 %842
        %844 = vadd.xlane.f32.xlu0 %v791
        %v845 = vpop.xlane.xlu0 %844
        %846 = vadd.xlane.f32.xlu0 %v792
        %v847 = vpop.xlane.xlu0 %846
        %848 = vadd.xlane.f32.xlu0 %v793
        %v849 = vpop.xlane.xlu0 %848
        %850 = vadd.xlane.f32.xlu0 %v794
        %v851 = vpop.xlane.xlu0 %850
        %852 = vadd.xlane.f32.xlu0 %v795
        %v853 = vpop.xlane.xlu0 %852
        %854 = vadd.xlane.f32.xlu0 %v796
        %v855 = vpop.xlane.xlu0 %854
        %856 = vadd.xlane.f32.xlu0 %v797
        %v857 = vpop.xlane.xlu0 %856
        %858 = vadd.xlane.f32.xlu0 %v798
        %v859 = vpop.xlane.xlu0 %858
        %860 = vadd.xlane.f32.xlu0 %v799
        %v861 = vpop.xlane.xlu0 %860
        %862 = vadd.xlane.f32.xlu0 %v800
        %v863 = vpop.xlane.xlu0 %862
        %864 = vadd.xlane.f32.xlu0 %v801
        %v865 = vpop.xlane.xlu0 %864
        %v866 = vmul.f32 %v707, 0.0078125
        %v867 = vmul.f32 %v709, 0.0078125
        %v868 = vmul.f32 %v711, 0.0078125
        %v869 = vmul.f32 %v713, 0.0078125
        %v870 = vmul.f32 %v715, 0.0078125
        %v871 = vmul.f32 %v717, 0.0078125
        %v872 = vmul.f32 %v719, 0.0078125
        %v873 = vmul.f32 %v721, 0.0078125
        %v874 = vmul.f32 %v723, 0.0078125
        %v875 = vmul.f32 %v725, 0.0078125
        %v876 = vmul.f32 %v727, 0.0078125
        %v877 = vmul.f32 %v729, 0.0078125
        %v878 = vmul.f32 %v731, 0.0078125
        %v879 = vmul.f32 %v733, 0.0078125
        %v880 = vmul.f32 %v735, 0.0078125
        %v881 = vmul.f32 %v737, 0.0078125
        %v882 = vmul.f32 %v739, 0.0078125
        %v883 = vmul.f32 %v741, 0.0078125
        %v884 = vmul.f32 %v743, 0.0078125
        %v885 = vmul.f32 %v745, 0.0078125
        %v886 = vmul.f32 %v747, 0.0078125
        %v887 = vmul.f32 %v749, 0.0078125
        %v888 = vmul.f32 %v751, 0.0078125
        %v889 = vmul.f32 %v753, 0.0078125
        %v890 = vmul.f32 %v755, 0.0078125
        %v891 = vmul.f32 %v757, 0.0078125
        %v892 = vmul.f32 %v759, 0.0078125
        %v893 = vmul.f32 %v761, 0.0078125
        %v894 = vmul.f32 %v763, 0.0078125
        %v895 = vmul.f32 %v765, 0.0078125
        %v896 = vmul.f32 %v767, 0.0078125
        %v897 = vmul.f32 %v769, 0.0078125
        %v898 = vmul.f32 %v803, 0.0078125
        %v899 = vmul.f32 %v805, 0.0078125
        %v900 = vmul.f32 %v807, 0.0078125
        %v901 = vmul.f32 %v809, 0.0078125
        %v902 = vmul.f32 %v811, 0.0078125
        %v903 = vmul.f32 %v813, 0.0078125
        %v904 = vmul.f32 %v815, 0.0078125
        %v905 = vmul.f32 %v817, 0.0078125
        %v906 = vmul.f32 %v819, 0.0078125
        %v907 = vmul.f32 %v821, 0.0078125
        %v908 = vmul.f32 %v823, 0.0078125
        %v909 = vmul.f32 %v825, 0.0078125
        %v910 = vmul.f32 %v827, 0.0078125
        %v911 = vmul.f32 %v829, 0.0078125
        %v912 = vmul.f32 %v831, 0.0078125
        %v913 = vmul.f32 %v833, 0.0078125
        %v914 = vmul.f32 %v835, 0.0078125
        %v915 = vmul.f32 %v837, 0.0078125
        %v916 = vmul.f32 %v839, 0.0078125
        %v917 = vmul.f32 %v841, 0.0078125
        %v918 = vmul.f32 %v843, 0.0078125
        %v919 = vmul.f32 %v845, 0.0078125
        %v920 = vmul.f32 %v847, 0.0078125
        %v921 = vmul.f32 %v849, 0.0078125
        %v922 = vmul.f32 %v851, 0.0078125
        %v923 = vmul.f32 %v853, 0.0078125
        %v924 = vmul.f32 %v855, 0.0078125
        %v925 = vmul.f32 %v857, 0.0078125
        %v926 = vmul.f32 %v859, 0.0078125
        %v927 = vmul.f32 %v861, 0.0078125
        %v928 = vmul.f32 %v863, 0.0078125
        %v929 = vmul.f32 %v865, 0.0078125
        %v930 = vmul.f32 %v866, %v866
        %v931 = vmul.f32 %v867, %v867
        %v932 = vmul.f32 %v868, %v868
        %v933 = vmul.f32 %v869, %v869
        %v934 = vmul.f32 %v870, %v870
        %v935 = vmul.f32 %v871, %v871
        %v936 = vmul.f32 %v872, %v872
        %v937 = vmul.f32 %v873, %v873
        %v938 = vmul.f32 %v874, %v874
        %v939 = vmul.f32 %v875, %v875
        %v940 = vmul.f32 %v876, %v876
        %v941 = vmul.f32 %v877, %v877
        %v942 = vmul.f32 %v878, %v878
        %v943 = vmul.f32 %v879, %v879
        %v944 = vmul.f32 %v880, %v880
        %v945 = vmul.f32 %v881, %v881
        %v946 = vmul.f32 %v882, %v882
        %v947 = vmul.f32 %v883, %v883
        %v948 = vmul.f32 %v884, %v884
        %v949 = vmul.f32 %v885, %v885
        %v950 = vmul.f32 %v886, %v886
        %v951 = vmul.f32 %v887, %v887
        %v952 = vmul.f32 %v888, %v888
        %v953 = vmul.f32 %v889, %v889
        %v954 = vmul.f32 %v890, %v890
        %v955 = vmul.f32 %v891, %v891
        %v956 = vmul.f32 %v892, %v892
        %v957 = vmul.f32 %v893, %v893
        %v958 = vmul.f32 %v894, %v894
        %v959 = vmul.f32 %v895, %v895
        %v960 = vmul.f32 %v896, %v896
        %v961 = vmul.f32 %v897, %v897
        %v962 = vsub.f32 %v898, %v930
        %v963 = vsub.f32 %v899, %v931
        %v964 = vsub.f32 %v900, %v932
        %v965 = vsub.f32 %v901, %v933
        %v966 = vsub.f32 %v902, %v934
        %v967 = vsub.f32 %v903, %v935
        %v968 = vsub.f32 %v904, %v936
        %v969 = vsub.f32 %v905, %v937
        %v970 = vsub.f32 %v906, %v938
        %v971 = vsub.f32 %v907, %v939
        %v972 = vsub.f32 %v908, %v940
        %v973 = vsub.f32 %v909, %v941
        %v974 = vsub.f32 %v910, %v942
        %v975 = vsub.f32 %v911, %v943
        %v976 = vsub.f32 %v912, %v944
        %v977 = vsub.f32 %v913, %v945
        %v978 = vsub.f32 %v914, %v946
        %v979 = vsub.f32 %v915, %v947
        %v980 = vsub.f32 %v916, %v948
        %v981 = vsub.f32 %v917, %v949
        %v982 = vsub.f32 %v918, %v950
        %v983 = vsub.f32 %v919, %v951
        %v984 = vsub.f32 %v920, %v952
        %v985 = vsub.f32 %v921, %v953
        %v986 = vsub.f32 %v922, %v954
        %v987 = vsub.f32 %v923, %v955
        %v988 = vsub.f32 %v924, %v956
        %v989 = vsub.f32 %v925, %v957
        %v990 = vsub.f32 %v926, %v958
        %v991 = vsub.f32 %v927, %v959
        %v992 = vsub.f32 %v928, %v960
        %v993 = vsub.f32 %v929, %v961
        %v994 = vmax.f32 %v962, 0.0
        %v995 = vmax.f32 %v963, 0.0
        %v996 = vmax.f32 %v964, 0.0
        %v997 = vmax.f32 %v965, 0.0
        %v998 = vmax.f32 %v966, 0.0
        %v999 = vmax.f32 %v967, 0.0
        %v1000 = vmax.f32 %v968, 0.0
        %v1001 = vmax.f32 %v969, 0.0
        %v1002 = vmax.f32 %v970, 0.0
        %v1003 = vmax.f32 %v971, 0.0
        %v1004 = vmax.f32 %v972, 0.0
        %v1005 = vmax.f32 %v973, 0.0
        %v1006 = vmax.f32 %v974, 0.0
        %v1007 = vmax.f32 %v975, 0.0
        %v1008 = vmax.f32 %v976, 0.0
        %v1009 = vmax.f32 %v977, 0.0
        %v1010 = vmax.f32 %v978, 0.0
        %v1011 = vmax.f32 %v979, 0.0
        %v1012 = vmax.f32 %v980, 0.0
        %v1013 = vmax.f32 %v981, 0.0
        %v1014 = vmax.f32 %v982, 0.0
        %v1015 = vmax.f32 %v983, 0.0
        %v1016 = vmax.f32 %v984, 0.0
        %v1017 = vmax.f32 %v985, 0.0
        %v1018 = vmax.f32 %v986, 0.0
        %v1019 = vmax.f32 %v987, 0.0
        %v1020 = vmax.f32 %v988, 0.0
        %v1021 = vmax.f32 %v989, 0.0
        %v1022 = vmax.f32 %v990, 0.0
        %v1023 = vmax.f32 %v991, 0.0
        %v1024 = vmax.f32 %v992, 0.0
        %v1025 = vmax.f32 %v993, 0.0
        %v1026 = vadd.f32 %v994, 1e-05
        %v1027 = vadd.f32 %v995, 1e-05
        %v1028 = vadd.f32 %v996, 1e-05
        %v1029 = vadd.f32 %v997, 1e-05
        %v1030 = vadd.f32 %v998, 1e-05
        %v1031 = vadd.f32 %v999, 1e-05
        %v1032 = vadd.f32 %v1000, 1e-05
        %v1033 = vadd.f32 %v1001, 1e-05
        %v1034 = vadd.f32 %v1002, 1e-05
        %v1035 = vadd.f32 %v1003, 1e-05
        %v1036 = vadd.f32 %v1004, 1e-05
        %v1037 = vadd.f32 %v1005, 1e-05
        %v1038 = vadd.f32 %v1006, 1e-05
        %v1039 = vadd.f32 %v1007, 1e-05
        %v1040 = vadd.f32 %v1008, 1e-05
        %v1041 = vadd.f32 %v1009, 1e-05
        %v1042 = vadd.f32 %v1010, 1e-05
        %v1043 = vadd.f32 %v1011, 1e-05
        %v1044 = vadd.f32 %v1012, 1e-05
        %v1045 = vadd.f32 %v1013, 1e-05
        %v1046 = vadd.f32 %v1014, 1e-05
        %v1047 = vadd.f32 %v1015, 1e-05
        %v1048 = vadd.f32 %v1016, 1e-05
        %v1049 = vadd.f32 %v1017, 1e-05
        %v1050 = vadd.f32 %v1018, 1e-05
        %v1051 = vadd.f32 %v1019, 1e-05
        %v1052 = vadd.f32 %v1020, 1e-05
        %v1053 = vadd.f32 %v1021, 1e-05
        %v1054 = vadd.f32 %v1022, 1e-05
        %v1055 = vadd.f32 %v1023, 1e-05
        %v1056 = vadd.f32 %v1024, 1e-05
        %v1057 = vadd.f32 %v1025, 1e-05
        %v1058 = vrsqrt.pop %v1026
        %v1059 = vrsqrt.pop %v1027
        %v1060 = vrsqrt.pop %v1028
        %v1061 = vrsqrt.pop %v1029
        %v1062 = vrsqrt.pop %v1030
        %v1063 = vrsqrt.pop %v1031
        %v1064 = vrsqrt.pop %v1032
        %v1065 = vrsqrt.pop %v1033
        %v1066 = vrsqrt.pop %v1034
        %v1067 = vrsqrt.pop %v1035
        %v1068 = vrsqrt.pop %v1036
        %v1069 = vrsqrt.pop %v1037
        %v1070 = vrsqrt.pop %v1038
        %v1071 = vrsqrt.pop %v1039
        %v1072 = vrsqrt.pop %v1040
        %v1073 = vrsqrt.pop %v1041
        %v1074 = vrsqrt.pop %v1042
        %v1075 = vrsqrt.pop %v1043
        %v1076 = vrsqrt.pop %v1044
        %v1077 = vrsqrt.pop %v1045
        %v1078 = vrsqrt.pop %v1046
        %v1079 = vrsqrt.pop %v1047
        %v1080 = vrsqrt.pop %v1048
        %v1081 = vrsqrt.pop %v1049
        %v1082 = vrsqrt.pop %v1050
        %v1083 = vrsqrt.pop %v1051
        %v1084 = vrsqrt.pop %v1052
        %v1085 = vrsqrt.pop %v1053
        %v1086 = vrsqrt.pop %v1054
        %v1087 = vrsqrt.pop %v1055
        %v1088 = vrsqrt.pop %v1056
        %v1089 = vrsqrt.pop %v1057
        %v1090 = vsub.f32 %v580, %v866
        %v1091 = vsub.f32 %v583, %v867
        %v1092 = vsub.f32 %v588, %v868
        %v1093 = vsub.f32 %v591, %v869
        %v1094 = vsub.f32 %v596, %v870
        %v1095 = vsub.f32 %v599, %v871
        %v1096 = vsub.f32 %v604, %v872
        %v1097 = vsub.f32 %v607, %v873
        %v1098 = vsub.f32 %v612, %v874
        %v1099 = vsub.f32 %v615, %v875
        %v1100 = vsub.f32 %v620, %v876
        %v1101 = vsub.f32 %v623, %v877
        %v1102 = vsub.f32 %v628, %v878
        %v1103 = vsub.f32 %v631, %v879
        %v1104 = vsub.f32 %v636, %v880
        %v1105 = vsub.f32 %v639, %v881
        %v1106 = vsub.f32 %v644, %v882
        %v1107 = vsub.f32 %v647, %v883
        %v1108 = vsub.f32 %v652, %v884
        %v1109 = vsub.f32 %v655, %v885
        %v1110 = vsub.f32 %v660, %v886
        %v1111 = vsub.f32 %v663, %v887
        %v1112 = vsub.f32 %v668, %v888
        %v1113 = vsub.f32 %v671, %v889
        %v1114 = vsub.f32 %v676, %v890
        %v1115 = vsub.f32 %v679, %v891
        %v1116 = vsub.f32 %v684, %v892
        %v1117 = vsub.f32 %v687, %v893
        %v1118 = vsub.f32 %v692, %v894
        %v1119 = vsub.f32 %v695, %v895
        %v1120 = vsub.f32 %v700, %v896
        %v1121 = vsub.f32 %v703, %v897
        %v1122 = vld [vmem:[%s3] sm:$0x1]
        %v1124 = vlaneseq
        %v1125 = vshrl.u32 %v1124, 7
        %v1126 = vsub.s32 0, %v1125
        %v1127 = vrot.slane %v1122, %v1126
        %v1129 = vmul.f32 %v1058, %v1127
        %v1130 = vmul.f32 %v1059, %v1127
        %v1131 = vmul.f32 %v1060, %v1127
        %v1132 = vmul.f32 %v1061, %v1127
        %v1133 = vmul.f32 %v1062, %v1127
        %v1134 = vmul.f32 %v1063, %v1127
        %v1135 = vmul.f32 %v1064, %v1127
        %v1136 = vmul.f32 %v1065, %v1127
        %v1137 = vmul.f32 %v1066, %v1127
        %v1138 = vmul.f32 %v1067, %v1127
        %v1139 = vmul.f32 %v1068, %v1127
        %v1140 = vmul.f32 %v1069, %v1127
        %v1141 = vmul.f32 %v1070, %v1127
        %v1142 = vmul.f32 %v1071, %v1127
        %v1143 = vmul.f32 %v1072, %v1127
        %v1144 = vmul.f32 %v1073, %v1127
        %v1145 = vmul.f32 %v1074, %v1127
        %v1146 = vmul.f32 %v1075, %v1127
        %v1147 = vmul.f32 %v1076, %v1127
        %v1148 = vmul.f32 %v1077, %v1127
        %v1149 = vmul.f32 %v1078, %v1127
        %v1150 = vmul.f32 %v1079, %v1127
        %v1151 = vmul.f32 %v1080, %v1127
        %v1152 = vmul.f32 %v1081, %v1127
        %v1153 = vmul.f32 %v1082, %v1127
        %v1154 = vmul.f32 %v1083, %v1127
        %v1155 = vmul.f32 %v1084, %v1127
        %v1156 = vmul.f32 %v1085, %v1127
        %v1157 = vmul.f32 %v1086, %v1127
        %v1158 = vmul.f32 %v1087, %v1127
        %v1159 = vmul.f32 %v1088, %v1127
        %v1160 = vmul.f32 %v1089, %v1127
        %v1161 = vmul.f32 %v1090, %v1129
        %v1162 = vmul.f32 %v1091, %v1130
        %v1163 = vmul.f32 %v1092, %v1131
        %v1164 = vmul.f32 %v1093, %v1132
        %v1165 = vmul.f32 %v1094, %v1133
        %v1166 = vmul.f32 %v1095, %v1134
        %v1167 = vmul.f32 %v1096, %v1135
        %v1168 = vmul.f32 %v1097, %v1136
        %v1169 = vmul.f32 %v1098, %v1137
        %v1170 = vmul.f32 %v1099, %v1138
        %v1171 = vmul.f32 %v1100, %v1139
        %v1172 = vmul.f32 %v1101, %v1140
        %v1173 = vmul.f32 %v1102, %v1141
        %v1174 = vmul.f32 %v1103, %v1142
        %v1175 = vmul.f32 %v1104, %v1143
        %v1176 = vmul.f32 %v1105, %v1144
        %v1177 = vmul.f32 %v1106, %v1145
        %v1178 = vmul.f32 %v1107, %v1146
        %v1179 = vmul.f32 %v1108, %v1147
        %v1180 = vmul.f32 %v1109, %v1148
        %v1181 = vmul.f32 %v1110, %v1149
        %v1182 = vmul.f32 %v1111, %v1150
        %v1183 = vmul.f32 %v1112, %v1151
        %v1184 = vmul.f32 %v1113, %v1152
        %v1185 = vmul.f32 %v1114, %v1153
        %v1186 = vmul.f32 %v1115, %v1154
        %v1187 = vmul.f32 %v1116, %v1155
        %v1188 = vmul.f32 %v1117, %v1156
        %v1189 = vmul.f32 %v1118, %v1157
        %v1190 = vmul.f32 %v1119, %v1158
        %v1191 = vmul.f32 %v1120, %v1159
        %v1192 = vmul.f32 %v1121, %v1160
        %v1193 = vld [vmem:[%s4] sm:$0x1]
        %v1195 = vlaneseq
        %v1196 = vshrl.u32 %v1195, 7
        %v1197 = vsub.s32 0, %v1196
        %v1198 = vrot.slane %v1193, %v1197
        %v1200 = vadd.f32 %v1161, %v1198
        %v1201 = vadd.f32 %v1162, %v1198
        %v1202 = vadd.f32 %v1163, %v1198
        %v1203 = vadd.f32 %v1164, %v1198
        %v1204 = vadd.f32 %v1165, %v1198
        %v1205 = vadd.f32 %v1166, %v1198
        %v1206 = vadd.f32 %v1167, %v1198
        %v1207 = vadd.f32 %v1168, %v1198
        %v1208 = vadd.f32 %v1169, %v1198
        %v1209 = vadd.f32 %v1170, %v1198
        %v1210 = vadd.f32 %v1171, %v1198
        %v1211 = vadd.f32 %v1172, %v1198
        %v1212 = vadd.f32 %v1173, %v1198
        %v1213 = vadd.f32 %v1174, %v1198
        %v1214 = vadd.f32 %v1175, %v1198
        %v1215 = vadd.f32 %v1176, %v1198
        %v1216 = vadd.f32 %v1177, %v1198
        %v1217 = vadd.f32 %v1178, %v1198
        %v1218 = vadd.f32 %v1179, %v1198
        %v1219 = vadd.f32 %v1180, %v1198
        %v1220 = vadd.f32 %v1181, %v1198
        %v1221 = vadd.f32 %v1182, %v1198
        %v1222 = vadd.f32 %v1183, %v1198
        %v1223 = vadd.f32 %v1184, %v1198
        %v1224 = vadd.f32 %v1185, %v1198
        %v1225 = vadd.f32 %v1186, %v1198
        %v1226 = vadd.f32 %v1187, %v1198
        %v1227 = vadd.f32 %v1188, %v1198
        %v1228 = vadd.f32 %v1189, %v1198
        %v1229 = vadd.f32 %v1190, %v1198
        %v1230 = vadd.f32 %v1191, %v1198
        %v1231 = vadd.f32 %v1192, %v1198
        %v1232 = vpack.c.bf16 %v1201, %v1200
        %v1233 = vpack.c.bf16 %v1203, %v1202
        %v1234 = vpack.c.bf16 %v1205, %v1204
        %v1235 = vpack.c.bf16 %v1207, %v1206
        %v1236 = vpack.c.bf16 %v1209, %v1208
        %v1237 = vpack.c.bf16 %v1211, %v1210
        %v1238 = vpack.c.bf16 %v1213, %v1212
        %v1239 = vpack.c.bf16 %v1215, %v1214
        %v1240 = vpack.c.bf16 %v1217, %v1216
        %v1241 = vpack.c.bf16 %v1219, %v1218
        %v1242 = vpack.c.bf16 %v1221, %v1220
        %v1243 = vpack.c.bf16 %v1223, %v1222
        %v1244 = vpack.c.bf16 %v1225, %v1224
        %v1245 = vpack.c.bf16 %v1227, %v1226
        %v1246 = vpack.c.bf16 %v1229, %v1228
        %v1247 = vpack.c.bf16 %v1231, %v1230
        %v1264 = vunpack.c.l.b16 %v1232
        %v1265 = vunpack.c.h.b16 %v1232
        %v1266 = vunpack.c.l.b16 %v1233
        %v1267 = vunpack.c.h.b16 %v1233
        %v1268 = vunpack.c.l.b16 %v1234
        %v1269 = vunpack.c.h.b16 %v1234
        %v1270 = vunpack.c.l.b16 %v1235
        %v1271 = vunpack.c.h.b16 %v1235
        %v1272 = vunpack.c.l.b16 %v1236
        %v1273 = vunpack.c.h.b16 %v1236
        %v1274 = vunpack.c.l.b16 %v1237
        %v1275 = vunpack.c.h.b16 %v1237
        %v1276 = vunpack.c.l.b16 %v1238
        %v1277 = vunpack.c.h.b16 %v1238
        %v1278 = vunpack.c.l.b16 %v1239
        %v1279 = vunpack.c.h.b16 %v1239
        %v1280 = vunpack.c.l.b16 %v1240
        %v1281 = vunpack.c.h.b16 %v1240
        %v1282 = vunpack.c.l.b16 %v1241
        %v1283 = vunpack.c.h.b16 %v1241
        %v1284 = vunpack.c.l.b16 %v1242
        %v1285 = vunpack.c.h.b16 %v1242
        %v1286 = vunpack.c.l.b16 %v1243
        %v1287 = vunpack.c.h.b16 %v1243
        %v1288 = vunpack.c.l.b16 %v1244
        %v1289 = vunpack.c.h.b16 %v1244
        %v1290 = vunpack.c.l.b16 %v1245
        %v1291 = vunpack.c.h.b16 %v1245
        %v1292 = vunpack.c.l.b16 %v1246
        %v1293 = vunpack.c.h.b16 %v1246
        %v1294 = vunpack.c.l.b16 %v1247
        %v1295 = vunpack.c.h.b16 %v1247
        %v1296 = vpack.c.b16 %v1264, %v1264
        %v1297 = vpack.c.b16 %v1265, %v1265
        %v1298 = vpack.c.b16 %v1266, %v1266
        %v1299 = vpack.c.b16 %v1267, %v1267
        %v1300 = vpack.c.b16 %v1268, %v1268
        %v1301 = vpack.c.b16 %v1269, %v1269
        %v1302 = vpack.c.b16 %v1270, %v1270
        %v1303 = vpack.c.b16 %v1271, %v1271
        %v1304 = vpack.c.b16 %v1272, %v1272
        %v1305 = vpack.c.b16 %v1273, %v1273
        %v1306 = vpack.c.b16 %v1274, %v1274
        %v1307 = vpack.c.b16 %v1275, %v1275
        %v1308 = vpack.c.b16 %v1276, %v1276
        %v1309 = vpack.c.b16 %v1277, %v1277
        %v1310 = vpack.c.b16 %v1278, %v1278
        %v1311 = vpack.c.b16 %v1279, %v1279
        %v1312 = vpack.c.b16 %v1280, %v1280
        %v1313 = vpack.c.b16 %v1281, %v1281
        %v1314 = vpack.c.b16 %v1282, %v1282
        %v1315 = vpack.c.b16 %v1283, %v1283
        %v1316 = vpack.c.b16 %v1284, %v1284
        %v1317 = vpack.c.b16 %v1285, %v1285
        %v1318 = vpack.c.b16 %v1286, %v1286
        %v1319 = vpack.c.b16 %v1287, %v1287
        %v1320 = vpack.c.b16 %v1288, %v1288
        %v1321 = vpack.c.b16 %v1289, %v1289
        %v1322 = vpack.c.b16 %v1290, %v1290
        %v1323 = vpack.c.b16 %v1291, %v1291
        %v1324 = vpack.c.b16 %v1292, %v1292
        %v1325 = vpack.c.b16 %v1293, %v1293
        %v1326 = vpack.c.b16 %v1294, %v1294
        %v1327 = vpack.c.b16 %v1295, %v1295
        %1360 = vst [vmem:[%s220] sm:$0xf] %v1296
        %1361 = vst [vmem:[%s220 + $0x4] sm:$0xf] %v1297
        %1362 = vst [vmem:[%s220 + $0x8] sm:$0xf] %v1298
        %1363 = vst [vmem:[%s220 + $0xc] sm:$0xf] %v1299
        %1364 = vst [vmem:[%s220 + $0x10] sm:$0xf] %v1300
        %1365 = vst [vmem:[%s220 + $0x14] sm:$0xf] %v1301
        %1366 = vst [vmem:[%s220 + $0x18] sm:$0xf] %v1302
        %1367 = vst [vmem:[%s220 + $0x1c] sm:$0xf] %v1303
        %1368 = vst [vmem:[%s220 + $0x20] sm:$0xf] %v1304
        %1369 = vst [vmem:[%s220 + $0x24] sm:$0xf] %v1305
        %1370 = vst [vmem:[%s220 + $0x28] sm:$0xf] %v1306
        %1371 = vst [vmem:[%s220 + $0x2c] sm:$0xf] %v1307
        %1372 = vst [vmem:[%s220 + $0x30] sm:$0xf] %v1308
        %1373 = vst [vmem:[%s220 + $0x34] sm:$0xf] %v1309
        %1374 = vst [vmem:[%s220 + $0x38] sm:$0xf] %v1310
        %1375 = vst [vmem:[%s220 + $0x3c] sm:$0xf] %v1311
        %1376 = vst [vmem:[%s220 + $0x40] sm:$0xf] %v1312
        %1377 = vst [vmem:[%s220 + $0x44] sm:$0xf] %v1313
        %1378 = vst [vmem:[%s220 + $0x48] sm:$0xf] %v1314
        %1379 = vst [vmem:[%s220 + $0x4c] sm:$0xf] %v1315
        %1380 = vst [vmem:[%s220 + $0x50] sm:$0xf] %v1316
        %1381 = vst [vmem:[%s220 + $0x54] sm:$0xf] %v1317
        %1382 = vst [vmem:[%s220 + $0x58] sm:$0xf] %v1318
        %1383 = vst [vmem:[%s220 + $0x5c] sm:$0xf] %v1319
        %1384 = vst [vmem:[%s220 + $0x60] sm:$0xf] %v1320
        %1385 = vst [vmem:[%s220 + $0x64] sm:$0xf] %v1321
        %1386 = vst [vmem:[%s220 + $0x68] sm:$0xf] %v1322
        %1387 = vst [vmem:[%s220 + $0x6c] sm:$0xf] %v1323
        %1388 = vst [vmem:[%s220 + $0x70] sm:$0xf] %v1324
        %1389 = vst [vmem:[%s220 + $0x74] sm:$0xf] %v1325
        %1390 = vst [vmem:[%s220 + $0x78] sm:$0xf] %v1326
        %1391 = vst [vmem:[%s220 + $0x7c] sm:$0xf] %v1327
        %s1392 = sand.u32 %s137, 1
        %s1393 = scalar_lea.sflag [#allocation3], %s1392
        %s1394 = sand.u32 %s137, 1
        %s1395 = smul.addr %s1394, 128
        %s1396 = scalar_lea.vmem [#allocation2], %s1395
        // Predicated region
        $region41: #{tpu_custom_call.1} parent=39 // pred_check
          %p1397 = pneg %p147
        $region42: #{tpu_custom_call.1} parent=39 // pred_check_branch
          %1399 = sbr.rel (%p1397) target = $region44
        $region43: #{tpu_custom_call.1} parent=39 // pred_region
          %s1400 = smul.u32 32, %s19
          %s1402 = ssub.s32 2048, 2048
          %1403 = vsyncadd %s1393, %s1402
          %s1404 = smul.addr %s1400, 64
          %s1405 = scalar_lea.hbm %s5, %s1404
          %s1406 = sshll.u32 %s1396, 4
          %s1407 = int_to_ptr.vmem [resolvable:$true] %s1406
          %1412 = dma.vmem_to_hbm [thread:$0]  %s1407, 2048, %s1405, %s1393, 64, 64, 4
        $region44: #{tpu_custom_call.1} parent=39 // pred_fallthru
          _
      $region40: #{tpu_custom_call.1} parent=5 // pred_fallthru
        _
      %p1413 = scmp.le.s32.totalorder 2, %s14
      // Predicated region
      $region45: #{tpu_custom_call.1} parent=5 // pred_check
        %p1414 = pneg %p1413
      $region46: #{tpu_custom_call.1} parent=5 // pred_check_branch
        %1416 = sbr.rel (%p1414) target = $region48
      $region47: #{tpu_custom_call.1} parent=5 // pred_region
        %s1417 = ssub.s32 %s14, 2
        // Predicated region
        $region49: #{tpu_custom_call.1} parent=47 // pred_check
          %p1418 = pneg %p153
        $region50: #{tpu_custom_call.1} parent=47 // pred_check_branch
          %1420 = sbr.rel (%p1418) target = $region52
        $region51: #{tpu_custom_call.1} parent=47 // pred_region
          %s1421 = sand.u32 %s138, 1
          %s1422 = scalar_lea.sflag [#allocation3], %s1421
          %s1423 = sand.u32 %s138, 1
          %s1424 = smul.addr %s1423, 128
          %s1425 = scalar_lea.vmem [#allocation2], %s1424
          %1426 = dma.done %s1422, 2048
        $region52: #{tpu_custom_call.1} parent=47 // pred_fallthru
          _
      $region48: #{tpu_custom_call.1} parent=5 // pred_fallthru
        _
    $region6: #{tpu_custom_call.1} parent=1 // loop_footer
      %s18 = sadd.s32 1, %s14
    $region7: #{tpu_custom_call.1} parent=1 // loop_footer_branch
      %13 = sbr.rel target = $region3
    $region8: #{tpu_custom_call.1} parent=1 // loop_exit
      _
    %1427 = vsyncpa [#allocation3], 1
    %s1428 = scalar_lea.sflag [#allocation3], 1
    %1429 = vsyncpa %s1428, 1

</llo_original>
